<compile_context>
chip_gen: v7x
topology: tpu7x:2x2x1
jax: 0.10.0
libtpu: 0.0.40
codegen_flags: <defaults>
</compile_context>

<pallas_src>
import functools

import jax
import jax.numpy as jnp
from jax import lax
from jax.experimental import pallas as pl
from jax.experimental.pallas import tpu as pltpu


_LANES = 128
_SUBLANES = 8
_MAX_TILE_ROWS = 512  # 512 x 128 f32 = 256 KiB per stream per buffer.


def _dpo_losses(lp1, lpr1, lp2, lpr2, wr, *, beta, eps):
    """Per-element DPO loss with a single softplus.

    losses_1 = -logsigmoid(d)  = softplus(-d)
    losses_2 = -logsigmoid(-d) = softplus(d) = losses_1 + d
    lerp(losses_2, losses_1, w) = losses_1 + (1 - w) * d
    """
    lp1 = lp1.astype(jnp.float32)
    lpr1 = lpr1.astype(jnp.float32)
    lp2 = lp2.astype(jnp.float32)
    lpr2 = lpr2.astype(jnp.float32)
    d = beta * ((lp1 - lpr1) - (lp2 - lpr2))
    # Numerically stable softplus(-d).
    losses_1 = jnp.maximum(-d, 0.0) + jnp.log1p(jnp.exp(-jnp.abs(d)))
    if wr is None:
        # Default win_rate = 1  ->  smoothed wr = 1 - eps  ->  (1 - wr) = eps.
        return losses_1 + eps * d
    wr = wr.astype(jnp.float32) * (1.0 - 2.0 * eps) + eps
    return losses_1 + (1.0 - wr) * d


def _losses_kernel(*refs, beta, eps, has_wr):
    """Writes per-element losses (used for reduction='none')."""
    if has_wr:
        lp1, lpr1, lp2, lpr2, wr_ref, out_ref = refs
        wr = wr_ref[...]
    else:
        lp1, lpr1, lp2, lpr2, out_ref = refs
        wr = None
    out_ref[...] = _dpo_losses(
        lp1[...], lpr1[...], lp2[...], lpr2[...], wr,
        beta=beta, eps=eps).astype(out_ref.dtype)


def _partial_sum_kernel(*refs, beta, eps, has_wr, tile_rows, n_valid,
                        need_mask):
    """Writes per-tile (8, 128) partial sums (used for 'mean'/'sum')."""
    if has_wr:
        lp1, lpr1, lp2, lpr2, wr_ref, psum_ref = refs
        wr = wr_ref[...]
    else:
        lp1, lpr1, lp2, lpr2, psum_ref = refs
        wr = None
    losses = _dpo_losses(lp1[...], lpr1[...], lp2[...], lpr2[...], wr,
                         beta=beta, eps=eps)
    if need_mask:
        # Mask padded tail elements out of the reduction (cheap VALU work,
        # only emitted when padding exists).
        row = lax.broadcasted_iota(jnp.int32, (tile_rows, _LANES), 0)
        lane = lax.broadcasted_iota(jnp.int32, (tile_rows, _LANES), 1)
        flat = (pl.program_id(0) * tile_rows + row) * _LANES + lane
        losses = jnp.where(flat < n_valid, losses, 0.0)
    # (tile_rows, 128) -> (tile_rows//8, 8, 128) -> sum over groups -> (8, 128)
    psum_ref[...] = jnp.sum(
        losses.reshape(tile_rows // _SUBLANES, _SUBLANES, _LANES), axis=0)


def dpo_loss(logp_1, logp_ref_1, logp_2, logp_ref_2, win_rate=None, *,
             beta, eps=0.0, reduction='mean', max_tile_rows=_MAX_TILE_ROWS):
    if reduction not in ('mean', 'sum', 'none'):
        raise ValueError(f'Unknown reduction: {reduction}')
    n = logp_1.shape[0]
    out_dtype = logp_1.dtype
    has_wr = win_rate is not None
    inputs = [logp_1, logp_ref_1, logp_2, logp_ref_2]
    if has_wr:
        inputs.append(win_rate)

    # Lane-dense 2-D layout: pad N to num_tiles * tile_rows * 128.
    rows_needed = -(-n // _LANES)
    tile_rows = min(int(max_tile_rows),
                    -(-rows_needed // _SUBLANES) * _SUBLANES)
    num_tiles = -(-rows_needed // tile_rows)
    rows_total = num_tiles * tile_rows
    n_padded = rows_total * _LANES

    def to_2d(x):
        x = x.reshape(-1)
        if n_padded != n:
            x = jnp.pad(x, (0, n_padded - n))
        return x.reshape(rows_total, _LANES)

    args = [to_2d(x) for x in inputs]
    in_specs = [pl.BlockSpec((tile_rows, _LANES), lambda i: (i, 0))
                for _ in args]
    cparams = pltpu.CompilerParams(dimension_semantics=("parallel",))

    if reduction == 'none':
        kernel = functools.partial(_losses_kernel, beta=float(beta),
                                   eps=float(eps), has_wr=has_wr)
        losses = pl.pallas_call(
            kernel,
            out_shape=jax.ShapeDtypeStruct((rows_total, _LANES), out_dtype),
            grid=(num_tiles,),
            in_specs=in_specs,
            out_specs=pl.BlockSpec((tile_rows, _LANES), lambda i: (i, 0)),
            compiler_params=cparams,
        )(*args)
        return losses.reshape(-1)[:n]

    kernel = functools.partial(_partial_sum_kernel, beta=float(beta),
                               eps=float(eps), has_wr=has_wr,
                               tile_rows=tile_rows, n_valid=n,
                               need_mask=(n_padded != n))
    partials = pl.pallas_call(
        kernel,
        out_shape=jax.ShapeDtypeStruct((num_tiles * _SUBLANES, _LANES),
                                       jnp.float32),
        grid=(num_tiles,),
        in_specs=in_specs,
        out_specs=pl.BlockSpec((_SUBLANES, _LANES), lambda i: (i, 0)),
        compiler_params=cparams,
    )(*args)
    total = jnp.sum(partials)
    if reduction == 'mean':
        total = total / n
    return total.astype(out_dtype)


def _dpo_loss_ref(logp_1, logp_ref_1, logp_2, logp_ref_2, win_rate=None,
                  *, beta, eps=0.0, reduction='mean'):
    # Pure-JAX reference mirroring the PyTorch module.
    win_rate = jnp.ones_like(logp_1) if win_rate is None else win_rate
    win_rate = win_rate * (1 - 2 * eps) + eps
    ratio_1 = logp_1 - logp_ref_1
    ratio_2 = logp_2 - logp_ref_2
    losses_1 = -jax.nn.log_sigmoid(beta * (ratio_1 - ratio_2))
    losses_2 = -jax.nn.log_sigmoid(beta * (ratio_2 - ratio_1))
    losses = losses_2 + win_rate * (losses_1 - losses_2)
    if reduction == 'mean':
        return jnp.mean(losses)
    elif reduction == 'sum':
        return jnp.sum(losses)
    return losses


if __name__ == "__main__":
    beta, eps = 0.1, 0.05
    key = jax.random.PRNGKey(0)
    ok = True

    def make_inputs(key, n):
        k1, k2, k3, k4, k5 = jax.random.split(key, 5)
        lp1 = -jax.nn.softplus(jax.random.normal(k1, (n,), jnp.float32))
        lpr1 = -jax.nn.softplus(jax.random.normal(k2, (n,), jnp.float32))
        lp2 = -jax.nn.softplus(jax.random.normal(k3, (n,), jnp.float32))
        lpr2 = -jax.nn.softplus(jax.random.normal(k4, (n,), jnp.float32))
        wr = jax.random.uniform(k5, (n,), jnp.float32)
        return lp1, lpr1, lp2, lpr2, wr

    # Case 1: small N (module's canonical 1-D batch), all reductions.
    k_a, k_b = jax.random.split(key)
    lp1, lpr1, lp2, lpr2, wr = make_inputs(k_a, 8)
    for red in ('mean', 'sum', 'none'):
        out = jax.block_until_ready(
            dpo_loss(lp1, lpr1, lp2, lpr2, wr, beta=beta, eps=eps,
                     reduction=red))
        ref = _dpo_loss_ref(lp1, lpr1, lp2, lpr2, wr, beta=beta, eps=eps,
                            reduction=red)
        ok = ok and bool(jnp.allclose(out, ref, rtol=1e-5, atol=1e-5))

    # Case 2: default win_rate=None path (no win_rate stream DMA'd).
    out_none = jax.block_until_ready(
        dpo_loss(lp1, lpr1, lp2, lpr2, beta=beta, eps=eps, reduction='mean'))
    ref_none = _dpo_loss_ref(lp1, lpr1, lp2, lpr2, beta=beta, eps=eps,
                             reduction='mean')
    ok = ok and bool(jnp.allclose(out_none, ref_none, rtol=1e-5, atol=1e-5))

    # Case 3: N not a multiple of 128, small tiles to exercise the multi-tile
    # grid, the padded-tail mask, and the partial-sum path.
    lp1b, lpr1b, lp2b, lpr2b, wrb = make_inputs(k_b, 2000)
    for red in ('mean', 'sum', 'none'):
        out = jax.block_until_ready(
            dpo_loss(lp1b, lpr1b, lp2b, lpr2b, wrb, beta=beta, eps=eps,
                     reduction=red, max_tile_rows=8))
        ref = _dpo_loss_ref(lp1b, lpr1b, lp2b, lpr2b, wrb, beta=beta, eps=eps,
                            reduction=red)
        ok = ok and bool(jnp.allclose(out, ref, rtol=1e-5, atol=1e-5))

    # Case 4: exact-multiple N (no padding -> mask elided at compile time).
    lp1c, lpr1c, lp2c, lpr2c, wrc = make_inputs(k_b, 1024)
    out_c = jax.block_until_ready(
        dpo_loss(lp1c, lpr1c, lp2c, lpr2c, wrc, beta=beta, eps=eps,
                 reduction='sum'))
    ref_c = _dpo_loss_ref(lp1c, lpr1c, lp2c, lpr2c, wrc, beta=beta, eps=eps,
                          reduction='sum')
    ok = ok and bool(jnp.allclose(out_c, ref_c, rtol=1e-5, atol=1e-5))

    if ok:
        print("KERNEL_OK")
    else:
        raise SystemExit("mismatch vs reference")
</pallas_src>

<mosaic_0001>
module attributes {stable_mosaic.version = 11 : i64} {
  func.func @_partial_sum_kernel(%arg0: i32, %arg1: memref<8x128xf32, #tpu.memory_space<vmem>>, %arg2: memref<8x128xf32, #tpu.memory_space<vmem>>, %arg3: memref<8x128xf32, #tpu.memory_space<vmem>>, %arg4: memref<8x128xf32, #tpu.memory_space<vmem>>, %arg5: memref<8x128xf32, #tpu.memory_space<vmem>>, %arg6: memref<8x128xf32, #tpu.memory_space<vmem>>) attributes {dimension_semantics = [#tpu.dimension_semantics<parallel>], iteration_bounds = array<i64: 1>, scalar_prefetch = 0 : i64, scratch_operands = 0 : i64, tpu.core_type = #tpu.core_type<tc>, window_params = [{transform_indices = @transform_0, window_bounds = array<i64: 8, 128>}, {transform_indices = @transform_1, window_bounds = array<i64: 8, 128>}, {transform_indices = @transform_2, window_bounds = array<i64: 8, 128>}, {transform_indices = @transform_3, window_bounds = array<i64: 8, 128>}, {transform_indices = @transform_4, window_bounds = array<i64: 8, 128>}, {transform_indices = @transform_5, window_bounds = array<i64: 8, 128>}]} {
    %c0 = arith.constant 0 : index
    %c0_0 = arith.constant 0 : index
    %0 = vector.load %arg5[%c0, %c0_0] : memref<8x128xf32, #tpu.memory_space<vmem>>, vector<8x128xf32>
    %c0_1 = arith.constant 0 : index
    %c0_2 = arith.constant 0 : index
    %1 = vector.load %arg1[%c0_1, %c0_2] : memref<8x128xf32, #tpu.memory_space<vmem>>, vector<8x128xf32>
    %c0_3 = arith.constant 0 : index
    %c0_4 = arith.constant 0 : index
    %2 = vector.load %arg2[%c0_3, %c0_4] : memref<8x128xf32, #tpu.memory_space<vmem>>, vector<8x128xf32>
    %c0_5 = arith.constant 0 : index
    %c0_6 = arith.constant 0 : index
    %3 = vector.load %arg3[%c0_5, %c0_6] : memref<8x128xf32, #tpu.memory_space<vmem>>, vector<8x128xf32>
    %c0_7 = arith.constant 0 : index
    %c0_8 = arith.constant 0 : index
    %4 = vector.load %arg4[%c0_7, %c0_8] : memref<8x128xf32, #tpu.memory_space<vmem>>, vector<8x128xf32>
    %5 = arith.subf %1, %2 : vector<8x128xf32>
    %6 = arith.subf %3, %4 : vector<8x128xf32>
    %7 = arith.subf %5, %6 : vector<8x128xf32>
    %cst = arith.constant 1.000000e-01 : f32
    %8 = vector.broadcast %cst : f32 to vector<8x128xf32>
    %9 = arith.mulf %8, %7 : vector<8x128xf32>
    %cst_9 = arith.constant 0.000000e+00 : f32
    %10 = vector.broadcast %cst_9 : f32 to vector<8x128xf32>
    %11 = arith.subf %10, %9 : vector<8x128xf32>
    %cst_10 = arith.constant 0.000000e+00 : f32
    %12 = vector.broadcast %cst_10 : f32 to vector<8x128xf32>
    %13 = arith.maximumf %11, %12 : vector<8x128xf32>
    %14 = math.absf %9 : vector<8x128xf32>
    %cst_11 = arith.constant 0.000000e+00 : f32
    %15 = vector.broadcast %cst_11 : f32 to vector<8x128xf32>
    %16 = arith.subf %15, %14 : vector<8x128xf32>
    %17 = math.exp %16 : vector<8x128xf32>
    %18 = math.log1p %17 : vector<8x128xf32>
    %19 = arith.addf %13, %18 : vector<8x128xf32>
    %cst_12 = arith.constant 0.899999976 : f32
    %20 = vector.broadcast %cst_12 : f32 to vector<8x128xf32>
    %21 = arith.mulf %0, %20 : vector<8x128xf32>
    %cst_13 = arith.constant 5.000000e-02 : f32
    %22 = vector.broadcast %cst_13 : f32 to vector<8x128xf32>
    %23 = arith.addf %21, %22 : vector<8x128xf32>
    %cst_14 = arith.constant 1.000000e+00 : f32
    %24 = vector.broadcast %cst_14 : f32 to vector<8x128xf32>
    %25 = arith.subf %24, %23 : vector<8x128xf32>
    %26 = arith.mulf %25, %9 : vector<8x128xf32>
    %27 = arith.addf %19, %26 : vector<8x128xf32>
    %28 = tpu.iota {dimensions = array<i32: 0>} : vector<8x128xi32>
    %29 = tpu.iota {dimensions = array<i32: 1>} : vector<8x128xi32>
    %c8_i32 = arith.constant 8 : i32
    %30 = arith.muli %arg0, %c8_i32 : i32
    %31 = vector.broadcast %30 : i32 to vector<8x128xi32>
    %32 = arith.addi %31, %28 : vector<8x128xi32>
    %c128_i32 = arith.constant 128 : i32
    %33 = vector.broadcast %c128_i32 : i32 to vector<8x128xi32>
    %34 = arith.muli %32, %33 : vector<8x128xi32>
    %35 = arith.addi %34, %29 : vector<8x128xi32>
    %c8_i32_15 = arith.constant 8 : i32
    %36 = vector.broadcast %c8_i32_15 : i32 to vector<8x128xi32>
    %37 = arith.cmpi slt, %35, %36 : vector<8x128xi32>
    %cst_16 = arith.constant 0.000000e+00 : f32
    %38 = vector.broadcast %cst_16 : f32 to vector<8x128xf32>
    %39 = arith.select %37, %27, %38 : vector<8x128xi1>, vector<8x128xf32>
    %40 = vector.shape_cast %39 : vector<8x128xf32> to vector<1x8x128xf32>
    %cst_17 = arith.constant dense<0.000000e+00> : vector<8x128xf32>
    %41 = vector.multi_reduction <add>, %40, %cst_17 [0] : vector<1x8x128xf32> to vector<8x128xf32>
    %c0_18 = arith.constant 0 : index
    %c0_19 = arith.constant 0 : index
    %42 = vector.load %arg6[%c0_18, %c0_19] : memref<8x128xf32, #tpu.memory_space<vmem>>, vector<8x128xf32>
    tpu.vector_store %arg6[%c0_18, %c0_19], %41 {strides = array<i32>} : memref<8x128xf32, #tpu.memory_space<vmem>>, vector<8x128xf32>,
    return
  }
  func.func @transform_0(%arg0: i32) -> (i32, i32) {
    %c0_i32 = arith.constant 0 : i32
    %c0_i32_0 = arith.constant 0 : i32
    return %arg0, %c0_i32 : i32, i32
  }
  func.func @transform_1(%arg0: i32) -> (i32, i32) {
    %c0_i32 = arith.constant 0 : i32
    %c0_i32_0 = arith.constant 0 : i32
    return %arg0, %c0_i32 : i32, i32
  }
  func.func @transform_2(%arg0: i32) -> (i32, i32) {
    %c0_i32 = arith.constant 0 : i32
    %c0_i32_0 = arith.constant 0 : i32
    return %arg0, %c0_i32 : i32, i32
  }
  func.func @transform_3(%arg0: i32) -> (i32, i32) {
    %c0_i32 = arith.constant 0 : i32
    %c0_i32_0 = arith.constant 0 : i32
    return %arg0, %c0_i32 : i32, i32
  }
  func.func @transform_4(%arg0: i32) -> (i32, i32) {
    %c0_i32 = arith.constant 0 : i32
    %c0_i32_0 = arith.constant 0 : i32
    return %arg0, %c0_i32 : i32, i32
  }
  func.func @transform_5(%arg0: i32) -> (i32, i32) {
    %c0_i32 = arith.constant 0 : i32
    %c0_i32_0 = arith.constant 0 : i32
    return %arg0, %c0_i32 : i32, i32
  }
}

</mosaic_0001>

<llo_original>
// kernel: tpu_custom_call.1
$region0: #{tpu_custom_call.1}
  #allocation0 [shape = 'u32[]', space=smem, size = 0x4, offset = 0x4, fixed_abs, tag = 'smem constant byte address 0x4 - core index']
  #allocation1 [shape = 'u32[144,128]{1,0:T(1,128)}', space=vmem, size = 0x12000, scoped, tag = 'internal scratch']
  %s0 = inlined_call_operand.hbm [shape: f32[8,128], index: 0, kind: input, shape index: {}]
  %s1 = inlined_call_operand.hbm [shape: f32[8,128], index: 1, kind: input, shape index: {}]
  %s2 = inlined_call_operand.hbm [shape: f32[8,128], index: 2, kind: input, shape index: {}]
  %s3 = inlined_call_operand.vmem [shape: f32[8,128], index: 3, kind: input, shape index: {}]
  %s4 = inlined_call_operand.hbm [shape: f32[8,128], index: 4, kind: input, shape index: {}]
  %s5 = inlined_call_operand.hbm [shape: f32[8,128], index: 5, kind: output, shape index: {}]
  %s6 = sld [smem:[#allocation0]]
  $region46: #{tpu_custom_call.1} parent=0
    _
  %s8 = ssub.s32 1, %s6
  %s9 = scalar_select 0, %s8, %s6
  $region1: #{tpu_custom_call.1} parent=0
    #allocation2 [shape = 'u8[4096]{0}', space=vmem, size = 0x1000, scoped, tag = 'input window, operand 0, single buffered']
    #allocation3 [shape = 's32[1]{0}', space=sflag, size = 0x4, scoped, tag = 'scoped memory for tpu_custom_call.1']
    #allocation4 [shape = 's32[1]{0}', space=sflag, size = 0x4, scoped, tag = 'scoped memory for tpu_custom_call.1']
    #allocation5 [shape = 'u8[4096]{0}', space=vmem, size = 0x1000, scoped, tag = 'input window, operand 1, single buffered']
    #allocation6 [shape = 's32[1]{0}', space=sflag, size = 0x4, scoped, tag = 'scoped memory for tpu_custom_call.1']
    #allocation7 [shape = 'u8[4096]{0}', space=vmem, size = 0x1000, scoped, tag = 'input window, operand 2, single buffered']
    #allocation8 [shape = 'u8[4096]{0}', space=vmem, size = 0x1000, scoped, tag = 'input window, operand 4, single buffered']
    #allocation9 [shape = 's32[1]{0}', space=sflag, size = 0x4, scoped, tag = 'scoped memory for tpu_custom_call.1']
    #allocation10 [shape = 'u8[4096]{0}', space=vmem, size = 0x1000, scoped, tag = 'output window, operand 0, single buffered']
    %10 = vsyncpa [#allocation3], 0
    %11 = vsyncpa [#allocation6], 0
    %12 = vsyncpa [#allocation9], 0
    %13 = vsyncpa [#allocation4], 0
    // Predicated region
    $region2: #{tpu_custom_call.1} parent=1 // pred_check
      _
    $region3: #{tpu_custom_call.1} parent=1 // pred_check_branch
      %15 = sbr.rel (0) target = $region5
    $region4: #{tpu_custom_call.1} parent=1 // pred_region
      %s17 = ssub.s32 128, 128
      %18 = vsyncadd [#allocation3], %s17
      %s20 = sshll.u32 [#allocation2], 4
      %s21 = int_to_ptr.vmem [resolvable:$true] %s20
      %23 = dma.hbm_to_vmem [thread:$0]  %s0, 128, %s21, [#allocation3]
    $region5: #{tpu_custom_call.1} parent=1 // pred_fallthru
      _
    // Predicated region
    $region6: #{tpu_custom_call.1} parent=1 // pred_check
      _
    $region7: #{tpu_custom_call.1} parent=1 // pred_check_branch
      %25 = sbr.rel (0) target = $region9
    $region8: #{tpu_custom_call.1} parent=1 // pred_region
      %s27 = ssub.s32 128, 128
      %28 = vsyncadd [#allocation6], %s27
      %s30 = sshll.u32 [#allocation5], 4
      %s31 = int_to_ptr.vmem [resolvable:$true] %s30
      %33 = dma.hbm_to_vmem [thread:$0]  %s1, 128, %s31, [#allocation6]
    $region9: #{tpu_custom_call.1} parent=1 // pred_fallthru
      _
    // Predicated region
    $region10: #{tpu_custom_call.1} parent=1 // pred_check
      _
    $region11: #{tpu_custom_call.1} parent=1 // pred_check_branch
      %35 = sbr.rel (0) target = $region13
    $region12: #{tpu_custom_call.1} parent=1 // pred_region
      %s37 = ssub.s32 128, 128
      %38 = vsyncadd [#allocation6], %s37
      %s40 = sshll.u32 [#allocation7], 4
      %s41 = int_to_ptr.vmem [resolvable:$true] %s40
      %43 = dma.hbm_to_vmem [thread:$0]  %s2, 128, %s41, [#allocation6]
    $region13: #{tpu_custom_call.1} parent=1 // pred_fallthru
      _
    // Predicated region
    $region14: #{tpu_custom_call.1} parent=1 // pred_check
      _
    $region15: #{tpu_custom_call.1} parent=1 // pred_check_branch
      %45 = sbr.rel (0) target = $region17
    $region16: #{tpu_custom_call.1} parent=1 // pred_region
      _
    $region17: #{tpu_custom_call.1} parent=1 // pred_fallthru
      _
    // Predicated region
    $region18: #{tpu_custom_call.1} parent=1 // pred_check
      _
    $region19: #{tpu_custom_call.1} parent=1 // pred_check_branch
      %47 = sbr.rel (0) target = $region21
    $region20: #{tpu_custom_call.1} parent=1 // pred_region
      %s49 = ssub.s32 128, 128
      %50 = vsyncadd [#allocation9], %s49
      %s52 = sshll.u32 [#allocation8], 4
      %s53 = int_to_ptr.vmem [resolvable:$true] %s52
      %55 = dma.hbm_to_vmem [thread:$0]  %s4, 128, %s53, [#allocation9]
    $region21: #{tpu_custom_call.1} parent=1 // pred_fallthru
      _
    // Predicated region
    $region22: #{tpu_custom_call.1} parent=1 // pred_check
      _
    $region23: #{tpu_custom_call.1} parent=1 // pred_check_branch
      %57 = sbr.rel (0) target = $region25
    $region24: #{tpu_custom_call.1} parent=1 // pred_region
      %58 = dma.done [#allocation3], 128
    $region25: #{tpu_custom_call.1} parent=1 // pred_fallthru
      _
    // Predicated region
    $region26: #{tpu_custom_call.1} parent=1 // pred_check
      _
    $region27: #{tpu_custom_call.1} parent=1 // pred_check_branch
      %60 = sbr.rel (0) target = $region29
    $region28: #{tpu_custom_call.1} parent=1 // pred_region
      %61 = dma.done [#allocation6], 128
    $region29: #{tpu_custom_call.1} parent=1 // pred_fallthru
      _
    // Predicated region
    $region30: #{tpu_custom_call.1} parent=1 // pred_check
      _
    $region31: #{tpu_custom_call.1} parent=1 // pred_check_branch
      %63 = sbr.rel (0) target = $region33
    $region32: #{tpu_custom_call.1} parent=1 // pred_region
      %64 = dma.done [#allocation6], 128
    $region33: #{tpu_custom_call.1} parent=1 // pred_fallthru
      _
    // Predicated region
    $region34: #{tpu_custom_call.1} parent=1 // pred_check
      _
    $region35: #{tpu_custom_call.1} parent=1 // pred_check_branch
      %66 = sbr.rel (0) target = $region37
    $region36: #{tpu_custom_call.1} parent=1 // pred_region
      %67 = dma.done [#allocation9], 128
    $region37: #{tpu_custom_call.1} parent=1 // pred_fallthru
      _
    %v68 = vld [vmem:[#allocation8] sm:$0xff]
    %v69 = vld [vmem:[#allocation2] sm:$0xff]
    %v70 = vld [vmem:[#allocation5] sm:$0xff]
    %v71 = vld [vmem:[#allocation7] sm:$0xff]
    %v72 = vld [vmem:[%s3] sm:$0xff]
    %v73 = vsub.f32 %v69, %v70
    %v74 = vsub.f32 %v71, %v72
    %v75 = vsub.f32 %v73, %v74
    %v76 = vmul.f32 %v75, 0.1
    %v77 = vsub.f32 0.0, %v76
    %v78 = vmax.f32 %v77, 0.0
    %v79 = vand.u32 2147483647, %v76
    %v80 = vsub.f32 0.0, %v79
    %v81 = vmul.f32 %v80, 1.442695
    %v82 = vpow.pop %v81
    %v83 = vadd.f32 %v82, 1.0
    %v84 = vlog2.pop %v83
    %v85 = vmul.f32 %v84, 0.6931472
    %v86 = vmul.f32 -0.5, %v82
    %v87 = vadd.f32 %v86, 1.0
    %v88 = vmul.f32 %v87, %v82
    %v89 = vand.u32 2147483647, %v82
    %vm90 = vcmp.lt.f32.partialorder %v89, 0.0004427343
    %v91 = vsel %vm90, %v88, %v85
    %v92 = vadd.f32 %v78, %v91
    %v93 = vmul.f32 %v68, 0.9
    %v94 = vadd.f32 %v93, 0.05
    %v95 = vsub.f32 1.0, %v94
    %v96 = vmul.f32 %v95, %v76
    %v97 = vadd.f32 %v92, %v96
    %v98 = vlaneseq
    %v99 = vshrl.u32 %v98, 7
    %v100 = vlaneseq
    %v101 = vand.u32 %v100, 127
    %s102 = smul.u32 0, 8
    %v103 = vstv %s102
    %v104 = vadd.s32 %v103, %v99
    %v105 = vmul.u32 %v104, 128
    %v106 = vadd.s32 %v105, %v101
    %vm107 = vcmp.lt.s32.totalorder %v106, 8
    %v108 = vsel %vm107, %v97, 0.0
    %v109 = vadd.f32 %v108, 0.0
    %110 = vst [vmem:[#allocation10] sm:$0xff] %v109
    // Predicated region
    $region38: #{tpu_custom_call.1} parent=1 // pred_check
      _
    $region39: #{tpu_custom_call.1} parent=1 // pred_check_branch
      %112 = sbr.rel (0) target = $region41
    $region40: #{tpu_custom_call.1} parent=1 // pred_region
      %s114 = ssub.s32 128, 128
      %115 = vsyncadd [#allocation4], %s114
      %s117 = sshll.u32 [#allocation10], 4
      %s118 = int_to_ptr.vmem [resolvable:$true] %s117
      %120 = dma.vmem_to_hbm [thread:$0]  %s118, 128, %s5, [#allocation4]
    $region41: #{tpu_custom_call.1} parent=1 // pred_fallthru
      _
    // Predicated region
    $region42: #{tpu_custom_call.1} parent=1 // pred_check
      _
    $region43: #{tpu_custom_call.1} parent=1 // pred_check_branch
      %122 = sbr.rel (0) target = $region45
    $region44: #{tpu_custom_call.1} parent=1 // pred_region
      %123 = dma.done [#allocation4], 128
    $region45: #{tpu_custom_call.1} parent=1 // pred_fallthru
      _
    %124 = vsyncpa [#allocation3], 1
    %125 = vsyncpa [#allocation6], 1
    %126 = vsyncpa [#allocation9], 1
    %127 = vsyncpa [#allocation4], 1

</llo_original>
